<compile_context>
chip_gen: v7x
topology: tpu7x:2x2x1
jax: 0.10.0
libtpu: 0.0.40
codegen_flags: <defaults>
</compile_context>

<pallas_src>
import functools

import jax
import jax.numpy as jnp
from jax.experimental import pallas as pl
from jax.experimental.pallas import tpu as pltpu

HID = 200        # hidden width of the PyTorch module
HPAD = 256       # padded hidden width (multiple of 128/256 MXU lanes)
TILE_B = 512     # default batch tile (>=512 rows ~ HBM roofline; fits v7x 32MiB scoped VMEM)


def _round_up(x, m):
    return ((x + m - 1) // m) * m


def _sigmoid(x):
    # exp on EUP, approx reciprocal on EUP -> keeps VALU slots free.
    return pl.reciprocal(1.0 + jnp.exp(-x), approx=True)


def mlp_kernel(x_ref, w1_ref, b1_ref, w2_ref, b2_ref, w3_ref, b3_ref,
               w4_ref, b4_ref, o_ref):
    # (TILE_B, n_cols) tile of activations; all weights resident in VMEM.
    x = x_ref[...].astype(jnp.bfloat16)

    h = jnp.dot(x, w1_ref[...], preferred_element_type=jnp.float32) + b1_ref[...]
    h = _sigmoid(h)

    h = jnp.dot(h.astype(jnp.bfloat16), w2_ref[...],
                preferred_element_type=jnp.float32) + b2_ref[...]
    h = _sigmoid(h)

    h = jnp.dot(h.astype(jnp.bfloat16), w3_ref[...],
                preferred_element_type=jnp.float32) + b3_ref[...]
    h = _sigmoid(h)

    # Final layer has N=1: a VPU multiply + lane reduction beats a 1-column matmul
    # (avoids an MXU drain on the critical path).  w4 is a (1, HPAD) row vector.
    logits = jnp.sum(h * w4_ref[...], axis=-1, keepdims=True) + b4_ref[...]
    o_ref[...] = _sigmoid(logits).astype(o_ref.dtype)


def _prepare_params(params, n_cols):
    """Pad hidden width 200 -> 256 (zeros) and cast matmul weights to bf16."""
    pad_h = HPAD - HID
    w1 = jnp.pad(params["w1"], ((0, 0), (0, pad_h))).astype(jnp.bfloat16)        # (n_cols, 256)
    b1 = jnp.pad(params["b1"], ((0, 0), (0, pad_h)))                              # (1, 256) f32
    w2 = jnp.pad(params["w2"], ((0, pad_h), (0, pad_h))).astype(jnp.bfloat16)     # (256, 256)
    b2 = jnp.pad(params["b2"], ((0, 0), (0, pad_h)))
    w3 = jnp.pad(params["w3"], ((0, pad_h), (0, pad_h))).astype(jnp.bfloat16)
    b3 = jnp.pad(params["b3"], ((0, 0), (0, pad_h)))
    # Last layer kept f32 (tiny; used on the VPU) and laid out as a row vector.
    w4 = jnp.pad(params["w4"], ((0, pad_h), (0, 0))).reshape(1, HPAD)             # (1, 256) f32
    b4 = params["b4"]                                                             # (1, 1)  f32
    return w1, b1, w2, b2, w3, b3, w4, b4


@functools.partial(jax.jit, static_argnames=("tile_b",))
def pytorch_model_forward(x, params, tile_b=TILE_B):
    """x: (B, n_cols) f32.  params: dict of (in,out) weights + (1,out) biases (f32)."""
    B, n_cols = x.shape
    w1, b1, w2, b2, w3, b3, w4, b4 = _prepare_params(params, n_cols)

    # Batch tile: multiple of 8 sublanes; pad the batch so the grid divides evenly.
    tb = min(tile_b, _round_up(B, 8))
    Bp = _round_up(B, tb)
    if Bp != B:
        x = jnp.pad(x, ((0, Bp - B), (0, 0)))
    grid = (Bp // tb,)

    const = lambda i: (0, 0)  # weights/biases: same (whole-array) block every step
    out = pl.pallas_call(
        mlp_kernel,
        out_shape=jax.ShapeDtypeStruct((Bp, 1), jnp.float32),
        grid=grid,
        in_specs=[
            pl.BlockSpec((tb, n_cols), lambda i: (i, 0)),   # x tile
            pl.BlockSpec((n_cols, HPAD), const),            # w1 (bf16)
            pl.BlockSpec((1, HPAD), const),                 # b1
            pl.BlockSpec((HPAD, HPAD), const),              # w2 (bf16)
            pl.BlockSpec((1, HPAD), const),                 # b2
            pl.BlockSpec((HPAD, HPAD), const),              # w3 (bf16)
            pl.BlockSpec((1, HPAD), const),                 # b3
            pl.BlockSpec((1, HPAD), const),                 # w4 row vector (f32)
            pl.BlockSpec((1, 1), const),                    # b4
        ],
        out_specs=pl.BlockSpec((tb, 1), lambda i: (i, 0)),
        compiler_params=pltpu.CompilerParams(
            dimension_semantics=("parallel",),
        ),
    )(x, w1, b1, w2, b2, w3, b3, w4, b4)
    return out[:B]


def init_params(key, n_cols):
    """PyTorch-style nn.Linear init: U(-1/sqrt(fan_in), 1/sqrt(fan_in)) for W and b.
    Weights stored as (in_features, out_features) so each layer is y = x @ W + b."""
    dims = [(n_cols, HID), (HID, HID), (HID, HID), (HID, 1)]
    params = {}
    for i, (fan_in, fan_out) in enumerate(dims, start=1):
        key, kw, kb = jax.random.split(key, 3)
        bound = 1.0 / jnp.sqrt(float(fan_in))
        params[f"w{i}"] = jax.random.uniform(
            kw, (fan_in, fan_out), jnp.float32, -bound, bound)
        params[f"b{i}"] = jax.random.uniform(
            kb, (1, fan_out), jnp.float32, -bound, bound)
    return params


def reference_forward(x, params):
    """Full-precision f32 reference (matches the PyTorch module's math)."""
    h = x
    for i in range(1, 5):
        h = jax.nn.sigmoid(h @ params[f"w{i}"] + params[f"b{i}"])
    return h


if __name__ == "__main__":
    key = jax.random.PRNGKey(0)
    n_cols = 32
    batch = 8

    kp, kx = jax.random.split(key)
    params = init_params(kp, n_cols)
    x = jax.random.normal(kx, (batch, n_cols), dtype=jnp.float32)

    out = pytorch_model_forward(x, params)
    out = jax.block_until_ready(out)

    ref = reference_forward(x, params)
    assert out.shape == (batch, 1)
    # Tolerance covers bf16 matmul operands (f32 accumulate) + approx reciprocal.
    assert jnp.allclose(out, ref, atol=2e-2, rtol=2e-2), (
        f"max abs err = {jnp.max(jnp.abs(out - ref))}")

    print("KERNEL_OK")
</pallas_src>

<mosaic_0001>
module attributes {stable_mosaic.version = 11 : i64} {
  func.func @mlp_kernel(%arg0: i32, %arg1: memref<8x32xf32, #tpu.memory_space<vmem>>, %arg2: memref<32x256xbf16, #tpu.memory_space<vmem>>, %arg3: memref<1x256xf32, #tpu.memory_space<vmem>>, %arg4: memref<256x256xbf16, #tpu.memory_space<vmem>>, %arg5: memref<1x256xf32, #tpu.memory_space<vmem>>, %arg6: memref<256x256xbf16, #tpu.memory_space<vmem>>, %arg7: memref<1x256xf32, #tpu.memory_space<vmem>>, %arg8: memref<1x256xf32, #tpu.memory_space<vmem>>, %arg9: memref<1x1xf32, #tpu.memory_space<vmem>>, %arg10: memref<8x1xf32, #tpu.memory_space<vmem>>) attributes {dimension_semantics = [#tpu.dimension_semantics<parallel>], iteration_bounds = array<i64: 1>, scalar_prefetch = 0 : i64, scratch_operands = 0 : i64, tpu.core_type = #tpu.core_type<tc>, window_params = [{transform_indices = @transform_0, window_bounds = array<i64: 8, 32>}, {pipeline_mode = #tpu.pipeline_mode<synchronous>, transform_indices = @transform_1, window_bounds = array<i64: 32, 256>}, {pipeline_mode = #tpu.pipeline_mode<synchronous>, transform_indices = @transform_2, window_bounds = array<i64: 1, 256>}, {pipeline_mode = #tpu.pipeline_mode<synchronous>, transform_indices = @transform_3, window_bounds = array<i64: 256, 256>}, {pipeline_mode = #tpu.pipeline_mode<synchronous>, transform_indices = @transform_4, window_bounds = array<i64: 1, 256>}, {pipeline_mode = #tpu.pipeline_mode<synchronous>, transform_indices = @transform_5, window_bounds = array<i64: 256, 256>}, {pipeline_mode = #tpu.pipeline_mode<synchronous>, transform_indices = @transform_6, window_bounds = array<i64: 1, 256>}, {pipeline_mode = #tpu.pipeline_mode<synchronous>, transform_indices = @transform_7, window_bounds = array<i64: 1, 256>}, {pipeline_mode = #tpu.pipeline_mode<synchronous>, transform_indices = @transform_8, window_bounds = array<i64: 1, 1>}, {transform_indices = @transform_9, window_bounds = array<i64: 8, 1>}]} {
    %c0 = arith.constant 0 : index
    %c0_0 = arith.constant 0 : index
    %0 = vector.load %arg1[%c0, %c0_0] : memref<8x32xf32, #tpu.memory_space<vmem>>, vector<8x32xf32>
    %1 = arith.truncf %0 : vector<8x32xf32> to vector<8x32xbf16>
    %c0_1 = arith.constant 0 : index
    %c0_2 = arith.constant 0 : index
    %2 = vector.load %arg2[%c0_1, %c0_2] : memref<32x256xbf16, #tpu.memory_space<vmem>>, vector<32x256xbf16>
    %cst = arith.constant dense<0.000000e+00> : vector<8x256xf32>
    %3 = tpu.matmul %1, %2, %cst {dimension_numbers = #tpu.dot_dimension_numbers<[1], [0], [0], [1], [0, 0, 1, 1], [], []>} : vector<8x32xbf16>, vector<32x256xbf16>, vector<8x256xf32> -> vector<8x256xf32>
    %c0_3 = arith.constant 0 : index
    %c0_4 = arith.constant 0 : index
    %4 = vector.load %arg3[%c0_3, %c0_4] : memref<1x256xf32, #tpu.memory_space<vmem>>, vector<1x256xf32>
    %5 = vector.broadcast %4 : vector<1x256xf32> to vector<8x256xf32>
    %6 = arith.addf %3, %5 : vector<8x256xf32>
    %cst_5 = arith.constant 0.000000e+00 : f32
    %7 = vector.broadcast %cst_5 : f32 to vector<8x256xf32>
    %8 = arith.subf %7, %6 : vector<8x256xf32>
    %9 = math.exp %8 : vector<8x256xf32>
    %cst_6 = arith.constant 1.000000e+00 : f32
    %10 = vector.broadcast %cst_6 : f32 to vector<8x256xf32>
    %11 = arith.addf %10, %9 : vector<8x256xf32>
    %12 = tpu.reciprocal %11 {approx = true} : vector<8x256xf32> -> vector<8x256xf32>
    %13 = arith.truncf %12 : vector<8x256xf32> to vector<8x256xbf16>
    %c0_7 = arith.constant 0 : index
    %c0_8 = arith.constant 0 : index
    %14 = vector.load %arg4[%c0_7, %c0_8] : memref<256x256xbf16, #tpu.memory_space<vmem>>, vector<256x256xbf16>
    %cst_9 = arith.constant dense<0.000000e+00> : vector<8x256xf32>
    %15 = tpu.matmul %13, %14, %cst_9 {dimension_numbers = #tpu.dot_dimension_numbers<[1], [0], [0], [1], [0, 0, 1, 1], [], []>} : vector<8x256xbf16>, vector<256x256xbf16>, vector<8x256xf32> -> vector<8x256xf32>
    %c0_10 = arith.constant 0 : index
    %c0_11 = arith.constant 0 : index
    %16 = vector.load %arg5[%c0_10, %c0_11] : memref<1x256xf32, #tpu.memory_space<vmem>>, vector<1x256xf32>
    %17 = vector.broadcast %16 : vector<1x256xf32> to vector<8x256xf32>
    %18 = arith.addf %15, %17 : vector<8x256xf32>
    %cst_12 = arith.constant 0.000000e+00 : f32
    %19 = vector.broadcast %cst_12 : f32 to vector<8x256xf32>
    %20 = arith.subf %19, %18 : vector<8x256xf32>
    %21 = math.exp %20 : vector<8x256xf32>
    %cst_13 = arith.constant 1.000000e+00 : f32
    %22 = vector.broadcast %cst_13 : f32 to vector<8x256xf32>
    %23 = arith.addf %22, %21 : vector<8x256xf32>
    %24 = tpu.reciprocal %23 {approx = true} : vector<8x256xf32> -> vector<8x256xf32>
    %25 = arith.truncf %24 : vector<8x256xf32> to vector<8x256xbf16>
    %c0_14 = arith.constant 0 : index
    %c0_15 = arith.constant 0 : index
    %26 = vector.load %arg6[%c0_14, %c0_15] : memref<256x256xbf16, #tpu.memory_space<vmem>>, vector<256x256xbf16>
    %cst_16 = arith.constant dense<0.000000e+00> : vector<8x256xf32>
    %27 = tpu.matmul %25, %26, %cst_16 {dimension_numbers = #tpu.dot_dimension_numbers<[1], [0], [0], [1], [0, 0, 1, 1], [], []>} : vector<8x256xbf16>, vector<256x256xbf16>, vector<8x256xf32> -> vector<8x256xf32>
    %c0_17 = arith.constant 0 : index
    %c0_18 = arith.constant 0 : index
    %28 = vector.load %arg7[%c0_17, %c0_18] : memref<1x256xf32, #tpu.memory_space<vmem>>, vector<1x256xf32>
    %29 = vector.broadcast %28 : vector<1x256xf32> to vector<8x256xf32>
    %30 = arith.addf %27, %29 : vector<8x256xf32>
    %cst_19 = arith.constant 0.000000e+00 : f32
    %31 = vector.broadcast %cst_19 : f32 to vector<8x256xf32>
    %32 = arith.subf %31, %30 : vector<8x256xf32>
    %33 = math.exp %32 : vector<8x256xf32>
    %cst_20 = arith.constant 1.000000e+00 : f32
    %34 = vector.broadcast %cst_20 : f32 to vector<8x256xf32>
    %35 = arith.addf %34, %33 : vector<8x256xf32>
    %36 = tpu.reciprocal %35 {approx = true} : vector<8x256xf32> -> vector<8x256xf32>
    %c0_21 = arith.constant 0 : index
    %c0_22 = arith.constant 0 : index
    %37 = vector.load %arg8[%c0_21, %c0_22] : memref<1x256xf32, #tpu.memory_space<vmem>>, vector<1x256xf32>
    %38 = vector.broadcast %37 : vector<1x256xf32> to vector<8x256xf32>
    %39 = arith.mulf %36, %38 : vector<8x256xf32>
    %cst_23 = arith.constant dense<0.000000e+00> : vector<8xf32>
    %40 = vector.multi_reduction <add>, %39, %cst_23 [1] : vector<8x256xf32> to vector<8xf32>
    %41 = vector.shape_cast %40 : vector<8xf32> to vector<8x1xf32>
    %c0_24 = arith.constant 0 : index
    %c0_25 = arith.constant 0 : index
    %42 = vector.load %arg9[%c0_24, %c0_25] : memref<1x1xf32, #tpu.memory_space<vmem>>, vector<1x1xf32>
    %43 = vector.broadcast %42 : vector<1x1xf32> to vector<8x1xf32>
    %44 = arith.addf %41, %43 : vector<8x1xf32>
    %cst_26 = arith.constant 0.000000e+00 : f32
    %45 = vector.broadcast %cst_26 : f32 to vector<8x1xf32>
    %46 = arith.subf %45, %44 : vector<8x1xf32>
    %47 = math.exp %46 : vector<8x1xf32>
    %cst_27 = arith.constant 1.000000e+00 : f32
    %48 = vector.broadcast %cst_27 : f32 to vector<8x1xf32>
    %49 = arith.addf %48, %47 : vector<8x1xf32>
    %50 = tpu.reciprocal %49 {approx = true} : vector<8x1xf32> -> vector<8x1xf32>
    %c0_28 = arith.constant 0 : index
    %c0_29 = arith.constant 0 : index
    %51 = vector.load %arg10[%c0_28, %c0_29] : memref<8x1xf32, #tpu.memory_space<vmem>>, vector<8x1xf32>
    tpu.vector_store %arg10[%c0_28, %c0_29], %50 {strides = array<i32>} : memref<8x1xf32, #tpu.memory_space<vmem>>, vector<8x1xf32>,
    return
  }
  func.func @transform_0(%arg0: i32) -> (i32, i32) {
    %c0_i32 = arith.constant 0 : i32
    %c0_i32_0 = arith.constant 0 : i32
    return %arg0, %c0_i32 : i32, i32
  }
  func.func @transform_1(%arg0: i32) -> (i32, i32) {
    %c0_i32 = arith.constant 0 : i32
    %c0_i32_0 = arith.constant 0 : i32
    %c0_i32_1 = arith.constant 0 : i32
    return %c0_i32, %c0_i32_0 : i32, i32
  }
  func.func @transform_2(%arg0: i32) -> (i32, i32) {
    %c0_i32 = arith.constant 0 : i32
    %c0_i32_0 = arith.constant 0 : i32
    %c0_i32_1 = arith.constant 0 : i32
    return %c0_i32, %c0_i32_0 : i32, i32
  }
  func.func @transform_3(%arg0: i32) -> (i32, i32) {
    %c0_i32 = arith.constant 0 : i32
    %c0_i32_0 = arith.constant 0 : i32
    %c0_i32_1 = arith.constant 0 : i32
    return %c0_i32, %c0_i32_0 : i32, i32
  }
  func.func @transform_4(%arg0: i32) -> (i32, i32) {
    %c0_i32 = arith.constant 0 : i32
    %c0_i32_0 = arith.constant 0 : i32
    %c0_i32_1 = arith.constant 0 : i32
    return %c0_i32, %c0_i32_0 : i32, i32
  }
  func.func @transform_5(%arg0: i32) -> (i32, i32) {
    %c0_i32 = arith.constant 0 : i32
    %c0_i32_0 = arith.constant 0 : i32
    %c0_i32_1 = arith.constant 0 : i32
    return %c0_i32, %c0_i32_0 : i32, i32
  }
  func.func @transform_6(%arg0: i32) -> (i32, i32) {
    %c0_i32 = arith.constant 0 : i32
    %c0_i32_0 = arith.constant 0 : i32
    %c0_i32_1 = arith.constant 0 : i32
    return %c0_i32, %c0_i32_0 : i32, i32
  }
  func.func @transform_7(%arg0: i32) -> (i32, i32) {
    %c0_i32 = arith.constant 0 : i32
    %c0_i32_0 = arith.constant 0 : i32
    %c0_i32_1 = arith.constant 0 : i32
    return %c0_i32, %c0_i32_0 : i32, i32
  }
  func.func @transform_8(%arg0: i32) -> (i32, i32) {
    %c0_i32 = arith.constant 0 : i32
    %c0_i32_0 = arith.constant 0 : i32
    %c0_i32_1 = arith.constant 0 : i32
    return %c0_i32, %c0_i32_0 : i32, i32
  }
  func.func @transform_9(%arg0: i32) -> (i32, i32) {
    %c0_i32 = arith.constant 0 : i32
    %c0_i32_0 = arith.constant 0 : i32
    return %arg0, %c0_i32 : i32, i32
  }
}

</mosaic_0001>

<llo_original>
// kernel: pytorch_model_forward.1
$region0: #{pytorch_model_forward.1}
  #allocation0 [shape = 'u32[]', space=smem, size = 0x4, offset = 0x4, fixed_abs, tag = 'smem constant byte address 0x4 - core index']
  #allocation1 [shape = 'u32[144,128]{1,0:T(1,128)}', space=vmem, size = 0x12000, scoped, tag = 'internal scratch']
  #allocation2 [shape = 'f32[1,1]{1,0:T(1,128)S(1)}', space=vmem, size = 0x200, scoped, tag = 'scoped memory for pytorch_model_forward.1']
  %s0 = inlined_call_operand.vmem [shape: f32[8,32], index: 0, kind: input, shape index: {}]
  %s1 = inlined_call_operand.vmem [shape: bf16[32,256], index: 1, kind: input, shape index: {}]
  %s2 = inlined_call_operand.vmem [shape: f32[1,256], index: 2, kind: input, shape index: {}]
  %s3 = inlined_call_operand.vmem [shape: bf16[256,256], index: 3, kind: input, shape index: {}]
  %s4 = inlined_call_operand.vmem [shape: f32[1,256], index: 4, kind: input, shape index: {}]
  %s5 = inlined_call_operand.vmem [shape: bf16[256,256], index: 5, kind: input, shape index: {}]
  %s6 = inlined_call_operand.vmem [shape: f32[1,256], index: 6, kind: input, shape index: {}]
  %s7 = inlined_call_operand.vmem [shape: f32[1,256], index: 7, kind: input, shape index: {}]
  %s8 = inlined_call_operand.<no memory space> [shape: f32[1,1], index: 8, kind: input, shape index: {}]
  %s9 = inlined_call_operand.vmem [shape: f32[8,1], index: 9, kind: output, shape index: {}]
  %s10 = sld [smem:[#allocation0]]
  $region46: #{pytorch_model_forward.1} parent=0
    _
  %s12 = ssub.s32 1, %s10
  %s13 = scalar_select 0, %s12, %s10
  %v14 = vstv %s8
  %15 = vst [vmem:[#allocation2] sm:$0x1] %v14
  // Predicated region
  $region2: #{pytorch_model_forward.1} parent=0 // pred_check
    _
  $region3: #{pytorch_model_forward.1} parent=0 // pred_check_branch
    %17 = sbr.rel (0) target = $region5
  $region4: #{pytorch_model_forward.1} parent=0 // pred_region
    _
  $region5: #{pytorch_model_forward.1} parent=0 // pred_fallthru
    _
  // Predicated region
  $region6: #{pytorch_model_forward.1} parent=0 // pred_check
    _
  $region7: #{pytorch_model_forward.1} parent=0 // pred_check_branch
    %19 = sbr.rel (0) target = $region9
  $region8: #{pytorch_model_forward.1} parent=0 // pred_region
    _
  $region9: #{pytorch_model_forward.1} parent=0 // pred_fallthru
    _
  // Predicated region
  $region10: #{pytorch_model_forward.1} parent=0 // pred_check
    _
  $region11: #{pytorch_model_forward.1} parent=0 // pred_check_branch
    %21 = sbr.rel (0) target = $region13
  $region12: #{pytorch_model_forward.1} parent=0 // pred_region
    _
  $region13: #{pytorch_model_forward.1} parent=0 // pred_fallthru
    _
  // Predicated region
  $region14: #{pytorch_model_forward.1} parent=0 // pred_check
    _
  $region15: #{pytorch_model_forward.1} parent=0 // pred_check_branch
    %23 = sbr.rel (0) target = $region17
  $region16: #{pytorch_model_forward.1} parent=0 // pred_region
    _
  $region17: #{pytorch_model_forward.1} parent=0 // pred_fallthru
    _
  // Predicated region
  $region18: #{pytorch_model_forward.1} parent=0 // pred_check
    _
  $region19: #{pytorch_model_forward.1} parent=0 // pred_check_branch
    %25 = sbr.rel (0) target = $region21
  $region20: #{pytorch_model_forward.1} parent=0 // pred_region
    _
  $region21: #{pytorch_model_forward.1} parent=0 // pred_fallthru
    _
  // Predicated region
  $region22: #{pytorch_model_forward.1} parent=0 // pred_check
    _
  $region23: #{pytorch_model_forward.1} parent=0 // pred_check_branch
    %27 = sbr.rel (0) target = $region25
  $region24: #{pytorch_model_forward.1} parent=0 // pred_region
    _
  $region25: #{pytorch_model_forward.1} parent=0 // pred_fallthru
    _
  // Predicated region
  $region26: #{pytorch_model_forward.1} parent=0 // pred_check
    _
  $region27: #{pytorch_model_forward.1} parent=0 // pred_check_branch
    %29 = sbr.rel (0) target = $region29
  $region28: #{pytorch_model_forward.1} parent=0 // pred_region
    _
  $region29: #{pytorch_model_forward.1} parent=0 // pred_fallthru
    _
  // Predicated region
  $region30: #{pytorch_model_forward.1} parent=0 // pred_check
    _
  $region31: #{pytorch_model_forward.1} parent=0 // pred_check_branch
    %31 = sbr.rel (0) target = $region33
  $region32: #{pytorch_model_forward.1} parent=0 // pred_region
    _
  $region33: #{pytorch_model_forward.1} parent=0 // pred_fallthru
    _
  // Predicated region
  $region34: #{pytorch_model_forward.1} parent=0 // pred_check
    _
  $region35: #{pytorch_model_forward.1} parent=0 // pred_check_branch
    %33 = sbr.rel (0) target = $region37
  $region36: #{pytorch_model_forward.1} parent=0 // pred_region
    _
  $region37: #{pytorch_model_forward.1} parent=0 // pred_fallthru
    _
  %v35 = vld [vmem:[%s0] sm:$0xff]
  %v36 = vpack.c.bf16 %v35, %v35
  %v37 = vld [vmem:[%s1] sm:$0xff]
  %v38 = vld [vmem:[%s1 + $0x8] sm:$0xff]
  %v39 = vld [vmem:[%s1 + $0x10] sm:$0xff]
  %v40 = vld [vmem:[%s1 + $0x18] sm:$0xff]
  %v41 = vld [vmem:[%s2] sm:$0x3]
  %v43 = vlaneseq
  %v44 = vshrl.u32 %v43, 7
  %v45 = vsub.s32 0, %v44
  %v46 = vrot.slane %v41, %v45
  %v47 = vlaneseq
  %v48 = vshrl.u32 %v47, 7
  %v49 = vsub.s32 1, %v48
  %v50 = vrot.slane %v41, %v49
  %v57 = vunpack.c.l.b16 %v37
  %v58 = vunpack.c.h.b16 %v37
  %v59 = vunpack.c.l.b16 %v38
  %v60 = vunpack.c.h.b16 %v38
  %v61 = vunpack.c.l.b16 %v39
  %v62 = vunpack.c.h.b16 %v39
  %v63 = vunpack.c.l.b16 %v40
  %v64 = vunpack.c.h.b16 %v40
  %v65 = vpack.c.b16 %v59, %v57
  %v66 = vpack.c.b16 %v60, %v58
  %v67 = vpack.c.b16 %v63, %v61
  %v68 = vpack.c.b16 %v64, %v62
  %vm73 = vcmask 261120
  %v75 = vsel %vm73, %v36, 0
  %77 = vmatprep.subr.bf16.mxu0 %v66
  %78 = vmatpush1.bf16.msra.mxu0 %v65
  %79 = vmatprep.subr.bf16.mxu0 %v68
  %80 = vmatpush1.bf16.msra.mxu0 %v67
  %81 = vmatprep.subr.bf16.mxu0 0
  %82 = vmatpush1.bf16.msra.mxu0 0
  %83 = vmatprep.subr.bf16.mxu0 0
  %84 = vmatpush1.bf16.msra.mxu0 0
  %85 = vmatprep.subr.bf16.mxu0 0
  %86 = vmatpush1.bf16.msra.mxu0 0
  %87 = vmatprep.subr.bf16.mxu0 0
  %88 = vmatpush1.bf16.msra.mxu0 0
  %89 = vmatprep.subr.bf16.mxu0 0
  %90 = vmatpush1.bf16.msra.mxu0 0
  %91 = vmatprep.subr.bf16.mxu0 0
  %92 = vmatpush1.bf16.msra.mxu0 0
  %93 = vmatprep.subr.bf16.mxu0 0
  %94 = vmatpush1.bf16.msra.mxu0 0
  %95 = vmatprep.subr.bf16.mxu0 0
  %96 = vmatpush1.bf16.msra.mxu0 0
  %97 = vmatprep.subr.bf16.mxu0 0
  %98 = vmatpush1.bf16.msra.mxu0 0
  %99 = vmatprep.subr.bf16.mxu0 0
  %100 = vmatpush1.bf16.msra.mxu0 0
  %101 = vmatprep.subr.bf16.mxu0 0
  %102 = vmatpush1.bf16.msra.mxu0 0
  %103 = vmatprep.subr.bf16.mxu0 0
  %104 = vmatpush1.bf16.msra.mxu0 0
  %105 = vmatprep.subr.bf16.mxu0 0
  %106 = vmatpush1.bf16.msra.mxu0 0
  %107 = vmatprep.subr.bf16.mxu0 0
  %108 = vmatpush1.bf16.msra.mxu0 0
  %109 = vmatprep.mubr.bf16.mxu0 0
  %110 = vmatmul.mubr.bf16.gmra.mrb[0].mxu0 %v75
  %v111 = vpop.f32.mrb[0].mxu0
  %v112 = vadd.f32 %v46, %v111
  %v113 = vpop.f32.mrb[0].mxu0
  %v114 = vadd.f32 %v50, %v113
  %v115 = vpop.f32.mrb[0].mxu0
  %v116 = vpop.f32.mrb[0].mxu0
  %117 = vdwg.mxu0
  %v118 = vsub.f32 0.0, %v112
  %v119 = vsub.f32 0.0, %v114
  %v120 = vmul.f32 %v118, 1.442695
  %v121 = vpow.pop %v120
  %v122 = vmul.f32 %v119, 1.442695
  %v123 = vpow.pop %v122
  %v124 = vadd.f32 %v121, 1.0
  %v125 = vadd.f32 %v123, 1.0
  %v126 = vrcp.pop %v124
  %v127 = vrcp.pop %v125
  %v128 = vpack.c.bf16 %v126, %v126
  %v129 = vpack.c.bf16 %v127, %v127
  %v130 = vld [vmem:[%s3] sm:$0xff]
  %v131 = vld [vmem:[%s3 + $0x8] sm:$0xff]
  %v132 = vld [vmem:[%s3 + $0x10] sm:$0xff]
  %v133 = vld [vmem:[%s3 + $0x18] sm:$0xff]
  %v134 = vld [vmem:[%s3 + $0x20] sm:$0xff]
  %v135 = vld [vmem:[%s3 + $0x28] sm:$0xff]
  %v136 = vld [vmem:[%s3 + $0x30] sm:$0xff]
  %v137 = vld [vmem:[%s3 + $0x38] sm:$0xff]
  %v138 = vld [vmem:[%s3 + $0x40] sm:$0xff]
  %v139 = vld [vmem:[%s3 + $0x48] sm:$0xff]
  %v140 = vld [vmem:[%s3 + $0x50] sm:$0xff]
  %v141 = vld [vmem:[%s3 + $0x58] sm:$0xff]
  %v142 = vld [vmem:[%s3 + $0x60] sm:$0xff]
  %v143 = vld [vmem:[%s3 + $0x68] sm:$0xff]
  %v144 = vld [vmem:[%s3 + $0x70] sm:$0xff]
  %v145 = vld [vmem:[%s3 + $0x78] sm:$0xff]
  %v146 = vld [vmem:[%s3 + $0x80] sm:$0xff]
  %v147 = vld [vmem:[%s3 + $0x88] sm:$0xff]
  %v148 = vld [vmem:[%s3 + $0x90] sm:$0xff]
  %v149 = vld [vmem:[%s3 + $0x98] sm:$0xff]
  %v150 = vld [vmem:[%s3 + $0xa0] sm:$0xff]
  %v151 = vld [vmem:[%s3 + $0xa8] sm:$0xff]
  %v152 = vld [vmem:[%s3 + $0xb0] sm:$0xff]
  %v153 = vld [vmem:[%s3 + $0xb8] sm:$0xff]
  %v154 = vld [vmem:[%s3 + $0xc0] sm:$0xff]
  %v155 = vld [vmem:[%s3 + $0xc8] sm:$0xff]
  %v156 = vld [vmem:[%s3 + $0xd0] sm:$0xff]
  %v157 = vld [vmem:[%s3 + $0xd8] sm:$0xff]
  %v158 = vld [vmem:[%s3 + $0xe0] sm:$0xff]
  %v159 = vld [vmem:[%s3 + $0xe8] sm:$0xff]
  %v160 = vld [vmem:[%s3 + $0xf0] sm:$0xff]
  %v161 = vld [vmem:[%s3 + $0xf8] sm:$0xff]
  %v162 = vld [vmem:[%s4] sm:$0x3]
  %v164 = vlaneseq
  %v165 = vshrl.u32 %v164, 7
  %v166 = vsub.s32 0, %v165
  %v167 = vrot.slane %v162, %v166
  %v168 = vlaneseq
  %v169 = vshrl.u32 %v168, 7
  %v170 = vsub.s32 1, %v169
  %v171 = vrot.slane %v162, %v170
  %v206 = vunpack.c.l.b16 %v130
  %v207 = vunpack.c.h.b16 %v130
  %v208 = vunpack.c.l.b16 %v131
  %v209 = vunpack.c.h.b16 %v131
  %v210 = vunpack.c.l.b16 %v132
  %v211 = vunpack.c.h.b16 %v132
  %v212 = vunpack.c.l.b16 %v133
  %v213 = vunpack.c.h.b16 %v133
  %v214 = vunpack.c.l.b16 %v134
  %v215 = vunpack.c.h.b16 %v134
  %v216 = vunpack.c.l.b16 %v135
  %v217 = vunpack.c.h.b16 %v135
  %v218 = vunpack.c.l.b16 %v136
  %v219 = vunpack.c.h.b16 %v136
  %v220 = vunpack.c.l.b16 %v137
  %v221 = vunpack.c.h.b16 %v137
  %v222 = vunpack.c.l.b16 %v138
  %v223 = vunpack.c.h.b16 %v138
  %v224 = vunpack.c.l.b16 %v139
  %v225 = vunpack.c.h.b16 %v139
  %v226 = vunpack.c.l.b16 %v140
  %v227 = vunpack.c.h.b16 %v140
  %v228 = vunpack.c.l.b16 %v141
  %v229 = vunpack.c.h.b16 %v141
  %v230 = vunpack.c.l.b16 %v142
  %v231 = vunpack.c.h.b16 %v142
  %v232 = vunpack.c.l.b16 %v143
  %v233 = vunpack.c.h.b16 %v143
  %v234 = vunpack.c.l.b16 %v144
  %v235 = vunpack.c.h.b16 %v144
  %v236 = vunpack.c.l.b16 %v145
  %v237 = vunpack.c.h.b16 %v145
  %v238 = vunpack.c.l.b16 %v146
  %v239 = vunpack.c.h.b16 %v146
  %v240 = vunpack.c.l.b16 %v147
  %v241 = vunpack.c.h.b16 %v147
  %v242 = vunpack.c.l.b16 %v148
  %v243 = vunpack.c.h.b16 %v148
  %v244 = vunpack.c.l.b16 %v149
  %v245 = vunpack.c.h.b16 %v149
  %v246 = vunpack.c.l.b16 %v150
  %v247 = vunpack.c.h.b16 %v150
  %v248 = vunpack.c.l.b16 %v151
  %v249 = vunpack.c.h.b16 %v151
  %v250 = vunpack.c.l.b16 %v152
  %v251 = vunpack.c.h.b16 %v152
  %v252 = vunpack.c.l.b16 %v153
  %v253 = vunpack.c.h.b16 %v153
  %v254 = vunpack.c.l.b16 %v154
  %v255 = vunpack.c.h.b16 %v154
  %v256 = vunpack.c.l.b16 %v155
  %v257 = vunpack.c.h.b16 %v155
  %v258 = vunpack.c.l.b16 %v156
  %v259 = vunpack.c.h.b16 %v156
  %v260 = vunpack.c.l.b16 %v157
  %v261 = vunpack.c.h.b16 %v157
  %v262 = vunpack.c.l.b16 %v158
  %v263 = vunpack.c.h.b16 %v158
  %v264 = vunpack.c.l.b16 %v159
  %v265 = vunpack.c.h.b16 %v159
  %v266 = vunpack.c.l.b16 %v160
  %v267 = vunpack.c.h.b16 %v160
  %v268 = vunpack.c.l.b16 %v161
  %v269 = vunpack.c.h.b16 %v161
  %v270 = vpack.c.b16 %v208, %v206
  %v271 = vpack.c.b16 %v209, %v207
  %v272 = vpack.c.b16 %v212, %v210
  %v273 = vpack.c.b16 %v213, %v211
  %v274 = vpack.c.b16 %v216, %v214
  %v275 = vpack.c.b16 %v217, %v215
  %v276 = vpack.c.b16 %v220, %v218
  %v277 = vpack.c.b16 %v221, %v219
  %v278 = vpack.c.b16 %v224, %v222
  %v279 = vpack.c.b16 %v225, %v223
  %v280 = vpack.c.b16 %v228, %v226
  %v281 = vpack.c.b16 %v229, %v227
  %v282 = vpack.c.b16 %v232, %v230
  %v283 = vpack.c.b16 %v233, %v231
  %v284 = vpack.c.b16 %v236, %v234
  %v285 = vpack.c.b16 %v237, %v235
  %v286 = vpack.c.b16 %v240, %v238
  %v287 = vpack.c.b16 %v241, %v239
  %v288 = vpack.c.b16 %v244, %v242
  %v289 = vpack.c.b16 %v245, %v243
  %v290 = vpack.c.b16 %v248, %v246
  %v291 = vpack.c.b16 %v249, %v247
  %v292 = vpack.c.b16 %v252, %v250
  %v293 = vpack.c.b16 %v253, %v251
  %v294 = vpack.c.b16 %v256, %v254
  %v295 = vpack.c.b16 %v257, %v255
  %v296 = vpack.c.b16 %v260, %v258
  %v297 = vpack.c.b16 %v261, %v259
  %v298 = vpack.c.b16 %v264, %v262
  %v299 = vpack.c.b16 %v265, %v263
  %v300 = vpack.c.b16 %v268, %v266
  %v301 = vpack.c.b16 %v269, %v267
  %334 = vmatprep.subr.bf16.mxu0 %v271
  %335 = vmatpush1.bf16.msra.mxu0 %v270
  %336 = vmatprep.subr.bf16.mxu0 %v273
  %337 = vmatpush1.bf16.msra.mxu0 %v272
  %338 = vmatprep.subr.bf16.mxu0 %v275
  %339 = vmatpush1.bf16.msra.mxu0 %v274
  %340 = vmatprep.subr.bf16.mxu0 %v277
  %341 = vmatpush1.bf16.msra.mxu0 %v276
  %342 = vmatprep.subr.bf16.mxu0 %v279
  %343 = vmatpush1.bf16.msra.mxu0 %v278
  %344 = vmatprep.subr.bf16.mxu0 %v281
  %345 = vmatpush1.bf16.msra.mxu0 %v280
  %346 = vmatprep.subr.bf16.mxu0 %v283
  %347 = vmatpush1.bf16.msra.mxu0 %v282
  %348 = vmatprep.subr.bf16.mxu0 %v285
  %349 = vmatpush1.bf16.msra.mxu0 %v284
  %350 = vmatprep.subr.bf16.mxu0 %v287
  %351 = vmatpush1.bf16.msra.mxu0 %v286
  %352 = vmatprep.subr.bf16.mxu0 %v289
  %353 = vmatpush1.bf16.msra.mxu0 %v288
  %354 = vmatprep.subr.bf16.mxu0 %v291
  %355 = vmatpush1.bf16.msra.mxu0 %v290
  %356 = vmatprep.subr.bf16.mxu0 %v293
  %357 = vmatpush1.bf16.msra.mxu0 %v292
  %358 = vmatprep.subr.bf16.mxu0 %v295
  %359 = vmatpush1.bf16.msra.mxu0 %v294
  %360 = vmatprep.subr.bf16.mxu0 %v297
  %361 = vmatpush1.bf16.msra.mxu0 %v296
  %362 = vmatprep.subr.bf16.mxu0 %v299
  %363 = vmatpush1.bf16.msra.mxu0 %v298
  %364 = vmatprep.subr.bf16.mxu0 %v301
  %365 = vmatpush1.bf16.msra.mxu0 %v300
  %366 = vmatprep.mubr.bf16.mxu0 %v129
  %367 = vmatmul.mubr.bf16.gmra.mrb[0].mxu0 %v128
  %v368 = vpop.f32.mrb[0].mxu0
  %v369 = vadd.f32 %v167, %v368
  %v370 = vpop.f32.mrb[0].mxu0
  %v371 = vadd.f32 %v171, %v370
  %v372 = vpop.f32.mrb[0].mxu0
  %v373 = vpop.f32.mrb[0].mxu0
  %374 = vdwg.mxu0
  %v375 = vsub.f32 0.0, %v369
  %v376 = vsub.f32 0.0, %v371
  %v377 = vmul.f32 %v375, 1.442695
  %v378 = vpow.pop %v377
  %v379 = vmul.f32 %v376, 1.442695
  %v380 = vpow.pop %v379
  %v381 = vadd.f32 %v378, 1.0
  %v382 = vadd.f32 %v380, 1.0
  %v383 = vrcp.pop %v381
  %v384 = vrcp.pop %v382
  %v385 = vpack.c.bf16 %v383, %v383
  %v386 = vpack.c.bf16 %v384, %v384
  %v387 = vld [vmem:[%s5] sm:$0xff]
  %v388 = vld [vmem:[%s5 + $0x8] sm:$0xff]
  %v389 = vld [vmem:[%s5 + $0x10] sm:$0xff]
  %v390 = vld [vmem:[%s5 + $0x18] sm:$0xff]
  %v391 = vld [vmem:[%s5 + $0x20] sm:$0xff]
  %v392 = vld [vmem:[%s5 + $0x28] sm:$0xff]
  %v393 = vld [vmem:[%s5 + $0x30] sm:$0xff]
  %v394 = vld [vmem:[%s5 + $0x38] sm:$0xff]
  %v395 = vld [vmem:[%s5 + $0x40] sm:$0xff]
  %v396 = vld [vmem:[%s5 + $0x48] sm:$0xff]
  %v397 = vld [vmem:[%s5 + $0x50] sm:$0xff]
  %v398 = vld [vmem:[%s5 + $0x58] sm:$0xff]
  %v399 = vld [vmem:[%s5 + $0x60] sm:$0xff]
  %v400 = vld [vmem:[%s5 + $0x68] sm:$0xff]
  %v401 = vld [vmem:[%s5 + $0x70] sm:$0xff]
  %v402 = vld [vmem:[%s5 + $0x78] sm:$0xff]
  %v403 = vld [vmem:[%s5 + $0x80] sm:$0xff]
  %v404 = vld [vmem:[%s5 + $0x88] sm:$0xff]
  %v405 = vld [vmem:[%s5 + $0x90] sm:$0xff]
  %v406 = vld [vmem:[%s5 + $0x98] sm:$0xff]
  %v407 = vld [vmem:[%s5 + $0xa0] sm:$0xff]
  %v408 = vld [vmem:[%s5 + $0xa8] sm:$0xff]
  %v409 = vld [vmem:[%s5 + $0xb0] sm:$0xff]
  %v410 = vld [vmem:[%s5 + $0xb8] sm:$0xff]
  %v411 = vld [vmem:[%s5 + $0xc0] sm:$0xff]
  %v412 = vld [vmem:[%s5 + $0xc8] sm:$0xff]
  %v413 = vld [vmem:[%s5 + $0xd0] sm:$0xff]
  %v414 = vld [vmem:[%s5 + $0xd8] sm:$0xff]
  %v415 = vld [vmem:[%s5 + $0xe0] sm:$0xff]
  %v416 = vld [vmem:[%s5 + $0xe8] sm:$0xff]
  %v417 = vld [vmem:[%s5 + $0xf0] sm:$0xff]
  %v418 = vld [vmem:[%s5 + $0xf8] sm:$0xff]
  %v419 = vld [vmem:[%s6] sm:$0x3]
  %v421 = vlaneseq
  %v422 = vshrl.u32 %v421, 7
  %v423 = vsub.s32 0, %v422
  %v424 = vrot.slane %v419, %v423
  %v425 = vlaneseq
  %v426 = vshrl.u32 %v425, 7
  %v427 = vsub.s32 1, %v426
  %v428 = vrot.slane %v419, %v427
  %v463 = vunpack.c.l.b16 %v387
  %v464 = vunpack.c.h.b16 %v387
  %v465 = vunpack.c.l.b16 %v388
  %v466 = vunpack.c.h.b16 %v388
  %v467 = vunpack.c.l.b16 %v389
  %v468 = vunpack.c.h.b16 %v389
  %v469 = vunpack.c.l.b16 %v390
  %v470 = vunpack.c.h.b16 %v390
  %v471 = vunpack.c.l.b16 %v391
  %v472 = vunpack.c.h.b16 %v391
  %v473 = vunpack.c.l.b16 %v392
  %v474 = vunpack.c.h.b16 %v392
  %v475 = vunpack.c.l.b16 %v393
  %v476 = vunpack.c.h.b16 %v393
  %v477 = vunpack.c.l.b16 %v394
  %v478 = vunpack.c.h.b16 %v394
  %v479 = vunpack.c.l.b16 %v395
  %v480 = vunpack.c.h.b16 %v395
  %v481 = vunpack.c.l.b16 %v396
  %v482 = vunpack.c.h.b16 %v396
  %v483 = vunpack.c.l.b16 %v397
  %v484 = vunpack.c.h.b16 %v397
  %v485 = vunpack.c.l.b16 %v398
  %v486 = vunpack.c.h.b16 %v398
  %v487 = vunpack.c.l.b16 %v399
  %v488 = vunpack.c.h.b16 %v399
  %v489 = vunpack.c.l.b16 %v400
  %v490 = vunpack.c.h.b16 %v400
  %v491 = vunpack.c.l.b16 %v401
  %v492 = vunpack.c.h.b16 %v401
  %v493 = vunpack.c.l.b16 %v402
  %v494 = vunpack.c.h.b16 %v402
  %v495 = vunpack.c.l.b16 %v403
  %v496 = vunpack.c.h.b16 %v403
  %v497 = vunpack.c.l.b16 %v404
  %v498 = vunpack.c.h.b16 %v404
  %v499 = vunpack.c.l.b16 %v405
  %v500 = vunpack.c.h.b16 %v405
  %v501 = vunpack.c.l.b16 %v406
  %v502 = vunpack.c.h.b16 %v406
  %v503 = vunpack.c.l.b16 %v407
  %v504 = vunpack.c.h.b16 %v407
  %v505 = vunpack.c.l.b16 %v408
  %v506 = vunpack.c.h.b16 %v408
  %v507 = vunpack.c.l.b16 %v409
  %v508 = vunpack.c.h.b16 %v409
  %v509 = vunpack.c.l.b16 %v410
  %v510 = vunpack.c.h.b16 %v410
  %v511 = vunpack.c.l.b16 %v411
  %v512 = vunpack.c.h.b16 %v411
  %v513 = vunpack.c.l.b16 %v412
  %v514 = vunpack.c.h.b16 %v412
  %v515 = vunpack.c.l.b16 %v413
  %v516 = vunpack.c.h.b16 %v413
  %v517 = vunpack.c.l.b16 %v414
  %v518 = vunpack.c.h.b16 %v414
  %v519 = vunpack.c.l.b16 %v415
  %v520 = vunpack.c.h.b16 %v415
  %v521 = vunpack.c.l.b16 %v416
  %v522 = vunpack.c.h.b16 %v416
  %v523 = vunpack.c.l.b16 %v417
  %v524 = vunpack.c.h.b16 %v417
  %v525 = vunpack.c.l.b16 %v418
  %v526 = vunpack.c.h.b16 %v418
  %v527 = vpack.c.b16 %v465, %v463
  %v528 = vpack.c.b16 %v466, %v464
  %v529 = vpack.c.b16 %v469, %v467
  %v530 = vpack.c.b16 %v470, %v468
  %v531 = vpack.c.b16 %v473, %v471
  %v532 = vpack.c.b16 %v474, %v472
  %v533 = vpack.c.b16 %v477, %v475
  %v534 = vpack.c.b16 %v478, %v476
  %v535 = vpack.c.b16 %v481, %v479
  %v536 = vpack.c.b16 %v482, %v480
  %v537 = vpack.c.b16 %v485, %v483
  %v538 = vpack.c.b16 %v486, %v484
  %v539 = vpack.c.b16 %v489, %v487
  %v540 = vpack.c.b16 %v490, %v488
  %v541 = vpack.c.b16 %v493, %v491
  %v542 = vpack.c.b16 %v494, %v492
  %v543 = vpack.c.b16 %v497, %v495
  %v544 = vpack.c.b16 %v498, %v496
  %v545 = vpack.c.b16 %v501, %v499
  %v546 = vpack.c.b16 %v502, %v500
  %v547 = vpack.c.b16 %v505, %v503
  %v548 = vpack.c.b16 %v506, %v504
  %v549 = vpack.c.b16 %v509, %v507
  %v550 = vpack.c.b16 %v510, %v508
  %v551 = vpack.c.b16 %v513, %v511
  %v552 = vpack.c.b16 %v514, %v512
  %v553 = vpack.c.b16 %v517, %v515
  %v554 = vpack.c.b16 %v518, %v516
  %v555 = vpack.c.b16 %v521, %v519
  %v556 = vpack.c.b16 %v522, %v520
  %v557 = vpack.c.b16 %v525, %v523
  %v558 = vpack.c.b16 %v526, %v524
  %591 = vmatprep.subr.bf16.mxu0 %v528
  %592 = vmatpush1.bf16.msra.mxu0 %v527
  %593 = vmatprep.subr.bf16.mxu0 %v530
  %594 = vmatpush1.bf16.msra.mxu0 %v529
  %595 = vmatprep.subr.bf16.mxu0 %v532
  %596 = vmatpush1.bf16.msra.mxu0 %v531
  %597 = vmatprep.subr.bf16.mxu0 %v534
  %598 = vmatpush1.bf16.msra.mxu0 %v533
  %599 = vmatprep.subr.bf16.mxu0 %v536
  %600 = vmatpush1.bf16.msra.mxu0 %v535
  %601 = vmatprep.subr.bf16.mxu0 %v538
  %602 = vmatpush1.bf16.msra.mxu0 %v537
  %603 = vmatprep.subr.bf16.mxu0 %v540
  %604 = vmatpush1.bf16.msra.mxu0 %v539
  %605 = vmatprep.subr.bf16.mxu0 %v542
  %606 = vmatpush1.bf16.msra.mxu0 %v541
  %607 = vmatprep.subr.bf16.mxu0 %v544
  %608 = vmatpush1.bf16.msra.mxu0 %v543
  %609 = vmatprep.subr.bf16.mxu0 %v546
  %610 = vmatpush1.bf16.msra.mxu0 %v545
  %611 = vmatprep.subr.bf16.mxu0 %v548
  %612 = vmatpush1.bf16.msra.mxu0 %v547
  %613 = vmatprep.subr.bf16.mxu0 %v550
  %614 = vmatpush1.bf16.msra.mxu0 %v549
  %615 = vmatprep.subr.bf16.mxu0 %v552
  %616 = vmatpush1.bf16.msra.mxu0 %v551
  %617 = vmatprep.subr.bf16.mxu0 %v554
  %618 = vmatpush1.bf16.msra.mxu0 %v553
  %619 = vmatprep.subr.bf16.mxu0 %v556
  %620 = vmatpush1.bf16.msra.mxu0 %v555
  %621 = vmatprep.subr.bf16.mxu0 %v558
  %622 = vmatpush1.bf16.msra.mxu0 %v557
  %623 = vmatprep.mubr.bf16.mxu0 %v386
  %624 = vmatmul.mubr.bf16.gmra.mrb[0].mxu0 %v385
  %v625 = vpop.f32.mrb[0].mxu0
  %v626 = vadd.f32 %v424, %v625
  %v627 = vpop.f32.mrb[0].mxu0
  %v628 = vadd.f32 %v428, %v627
  %v629 = vpop.f32.mrb[0].mxu0
  %v630 = vpop.f32.mrb[0].mxu0
  %631 = vdwg.mxu0
  %v632 = vsub.f32 0.0, %v626
  %v633 = vsub.f32 0.0, %v628
  %v634 = vmul.f32 %v632, 1.442695
  %v635 = vpow.pop %v634
  %v636 = vmul.f32 %v633, 1.442695
  %v637 = vpow.pop %v636
  %v638 = vadd.f32 %v635, 1.0
  %v639 = vadd.f32 %v637, 1.0
  %v640 = vrcp.pop %v638
  %v641 = vrcp.pop %v639
  %v642 = vld [vmem:[%s7] sm:$0x3]
  %v644 = vlaneseq
  %v645 = vshrl.u32 %v644, 7
  %v646 = vsub.s32 0, %v645
  %v647 = vrot.slane %v642, %v646
  %v648 = vlaneseq
  %v649 = vshrl.u32 %v648, 7
  %v650 = vsub.s32 1, %v649
  %v651 = vrot.slane %v642, %v650
  %v654 = vmul.f32 %v640, %v647
  %v655 = vmul.f32 %v641, %v651
  %v656 = vadd.f32 %v654, %v655
  %657 = vadd.xlane.f32.xlu0 %v656
  %v658 = vpop.xlane.xlu0 %657
  %v659 = vld [vmem:[#allocation2] sm:$0x1]
  %v661 = vlaneseq
  %v662 = vshrl.u32 %v661, 7
  %v663 = vsub.s32 0, %v662
  %v664 = vrot.slane %v659, %v663
  %v666 = vadd.f32 %v658, %v664
  %v667 = vsub.f32 0.0, %v666
  %v668 = vmul.f32 %v667, 1.442695
  %v669 = vpow.pop %v668
  %v670 = vadd.f32 %v669, 1.0
  %v671 = vrcp.pop %v670
  %vm672 = vcmask 7168
  %673 = vst.msk [vmem:[%s9] sm:$0xff] %vm672, %v671
  // Predicated region
  $region38: #{pytorch_model_forward.1} parent=0 // pred_check
    _
  $region39: #{pytorch_model_forward.1} parent=0 // pred_check_branch
    %675 = sbr.rel (0) target = $region41
  $region40: #{pytorch_model_forward.1} parent=0 // pred_region
    _
  $region41: #{pytorch_model_forward.1} parent=0 // pred_fallthru
    _
  // Predicated region
  $region42: #{pytorch_model_forward.1} parent=0 // pred_check
    _
  $region43: #{pytorch_model_forward.1} parent=0 // pred_check_branch
    %677 = sbr.rel (0) target = $region45
  $region44: #{pytorch_model_forward.1} parent=0 // pred_region
    _
  $region45: #{pytorch_model_forward.1} parent=0 // pred_fallthru
    _

</llo_original>
